<compile_context>
chip_gen: v5e
topology: v5e:2x2
jax: 0.10.0
libtpu: 0.0.40
codegen_flags: <defaults>
</compile_context>

<pallas_src>
import functools

import jax
import jax.numpy as jnp
from jax import lax
from jax.experimental import pallas as pl
from jax.experimental.pallas import tpu as pltpu


_LANE = 128
_RESIDENT_VMEM_BUDGET = 40 * 1024 * 1024     # leave headroom under v7x's 64 MiB VMEM
_VMEM_LIMIT_CAP = 48 * 1024 * 1024
_TINY_FLOPS = 2 * 32 * 128 * 128             # below this, plain XLA dot beats the kernel


def _round_up(x: int, m: int) -> int:
    return ((x + m - 1) // m) * m


def _sublane_multiple(dtype) -> int:
    # Rows per packed 32-bit sublane group: 8 for f32, 16 for bf16, 32 for int8/fp8.
    return max(8, 32 // jnp.dtype(dtype).itemsize)


def _pick_tile(dim: int, align: int, t_max: int) -> int:
    """Largest tile (multiple of `align`, <= t_max) that keeps padding waste small."""
    t_max = max(align, (t_max // align) * align)
    d_aligned = _round_up(dim, align)
    if d_aligned <= t_max:
        return d_aligned                       # single tile, only alignment padding
    best = t_max
    best_pad = _round_up(dim, t_max) - dim
    c = t_max - align
    while c >= align:
        pad = _round_up(dim, c) - dim
        if pad + align <= best_pad:            # shrink only if it meaningfully cuts waste
            best, best_pad = c, pad
        c -= align
    return best


def _pad2(a, rows: int, cols: int):
    pr, pc = rows - a.shape[0], cols - a.shape[1]
    if pr == 0 and pc == 0:
        return a
    return jnp.pad(a, ((0, pr), (0, pc)))


# ---------------------------------------------------------------------------
# Kernels
# ---------------------------------------------------------------------------

def _dot_nt(x, w, precision):
    # x: (m, k), w: (n, k)  ->  (m, n); MXU consumes the transposed RHS natively.
    return lax.dot_general(
        x, w,
        dimension_numbers=(((1,), (1,)), ((), ())),
        precision=precision,
        preferred_element_type=jnp.float32,
    )


def _resident_kernel(x_ref, w_ref, b_ref, o_ref, *, lr_mul, precision):
    # x:(tm,Kp)  w:(Np,Kp)  b:(1,Np)  o:(tm,Np); weight/bias resident across the grid.
    acc = _dot_nt(x_ref[...], w_ref[...], precision)
    o_ref[...] = ((acc + b_ref[...]) * lr_mul).astype(o_ref.dtype)


def _tiled_kernel_f32(x_ref, w_ref, b_ref, o_ref, *, lr_mul, precision):
    # f32 output: accumulate directly into the (K-invariant, VMEM-resident) output block.
    k = pl.program_id(2)

    @pl.when(k == 0)
    def _():
        o_ref[...] = jnp.zeros_like(o_ref)

    o_ref[...] += _dot_nt(x_ref[...], w_ref[...], precision)

    @pl.when(k == pl.num_programs(2) - 1)
    def _():
        o_ref[...] = (o_ref[...] + b_ref[...]) * lr_mul


def _tiled_kernel_acc(x_ref, w_ref, b_ref, o_ref, acc_ref, *, lr_mul, precision):
    # Narrow output dtype: keep an f32 scratch accumulator, cast on the final store.
    k = pl.program_id(2)

    @pl.when(k == 0)
    def _():
        acc_ref[...] = jnp.zeros_like(acc_ref)

    acc_ref[...] += _dot_nt(x_ref[...], w_ref[...], precision)

    @pl.when(k == pl.num_programs(2) - 1)
    def _():
        o_ref[...] = ((acc_ref[...] + b_ref[...]) * lr_mul).astype(o_ref.dtype)


# ---------------------------------------------------------------------------
# Wrapper
# ---------------------------------------------------------------------------

def equal_linear(x, weight, bias=None, lr_mul=1.0, *,
                 tm=512, tn=512, tk=1024,
                 precision=None, force_tiled=False):
    """Pallas equivalent of EqualLinear.forward(x).

    x:      (..., in_dim)
    weight: (out_dim, in_dim)   -- consumed as-is (no transpose)
    bias:   (out_dim,) or None
    """
    *lead, K = x.shape
    N, K2 = weight.shape
    assert K == K2, (K, K2)
    out_dtype = x.dtype
    lr = float(lr_mul)

    if bias is None:
        bias = jnp.zeros((N,), dtype=out_dtype)
    assert bias.shape == (N,), bias.shape

    x2 = x.reshape(-1, K)
    M = x2.shape[0]

    # Tiny problems: the kernel is pure fixed overhead (pads + grid step + DMA);
    # a single fused XLA dot wins.
    if (2 * M * N * K <= _TINY_FLOPS) and not force_tiled:
        out = jnp.matmul(x2, (weight * lr).T, precision=precision) + bias * lr
        return out.astype(out_dtype).reshape(*lead, N)

    x_sz = jnp.dtype(x2.dtype).itemsize
    w_sz = jnp.dtype(weight.dtype).itemsize
    b_sz = jnp.dtype(bias.dtype).itemsize
    o_sz = jnp.dtype(out_dtype).itemsize

    # M tiling: dtype-aware sublane rounding, minimal padded rows, and >=2 tiles for
    # large M so both v7x TensorCores get a parallel block.
    sub = _sublane_multiple(x2.dtype)
    tm = _pick_tile(M, sub, tm)
    Mp = _round_up(M, tm)
    if Mp // tm < 2 and M >= 256:
        tm = _round_up(-(-M // 2), sub)
        Mp = _round_up(M, tm)

    Kp_full = _round_up(K, _LANE)
    Np_full = _round_up(N, _LANE)

    # Weight-resident path: whole weight + one x/out block (double-buffered) in VMEM.
    resident_est = (2 * tm * Kp_full * x_sz
                    + 2 * Np_full * Kp_full * w_sz
                    + 2 * tm * Np_full * o_sz
                    + 8 * Np_full * b_sz)
    use_resident = (not force_tiled) and resident_est <= _RESIDENT_VMEM_BUDGET

    if use_resident:
        Kp, Np = Kp_full, Np_full
        x_p = _pad2(x2, Mp, Kp)
        w_p = _pad2(weight, Np, Kp)                    # stays (N, K): no transpose
        b_p = _pad2(bias.reshape(1, N), 1, Np)

        grid = (Mp // tm,)
        flops = 2 * Mp * Np * Kp
        bytes_accessed = Mp * Kp * x_sz + Np * Kp * w_sz + Mp * Np * o_sz + Np * b_sz
        vmem_limit = int(min(_VMEM_LIMIT_CAP, max(32 << 20, resident_est * 5 // 4)))

        out_p = pl.pallas_call(
            functools.partial(_resident_kernel, lr_mul=lr, precision=precision),
            out_shape=jax.ShapeDtypeStruct((Mp, Np), out_dtype),
            grid_spec=pltpu.PrefetchScalarGridSpec(
                num_scalar_prefetch=0,
                grid=grid,
                in_specs=[
                    pl.BlockSpec((tm, Kp), lambda i: (i, 0)),
                    pl.BlockSpec((Np, Kp), lambda i: (0, 0)),   # resident weight
                    pl.BlockSpec((1, Np), lambda i: (0, 0)),    # resident bias
                ],
                out_specs=pl.BlockSpec((tm, Np), lambda i: (i, 0)),
            ),
            compiler_params=pltpu.CompilerParams(
                dimension_semantics=("parallel",),
                vmem_limit_bytes=vmem_limit,
            ),
            cost_estimate=pl.CostEstimate(
                flops=int(flops), transcendentals=0, bytes_accessed=int(bytes_accessed)),
        )(x_p, w_p, b_p)
    else:
        # General tiled path: classic (i, j, k) grid, reduction axis last.
        tn = _pick_tile(N, _LANE, tn)
        tk = _pick_tile(K, _LANE, tk)
        Np = _round_up(N, tn)
        Kp = _round_up(K, tk)

        x_p = _pad2(x2, Mp, Kp)
        w_p = _pad2(weight, Np, Kp)                    # stays (N, K): no transpose
        b_p = _pad2(bias.reshape(1, N), 1, Np)

        grid = (Mp // tm, Np // tn, Kp // tk)
        acc_in_out = jnp.dtype(out_dtype) == jnp.dtype(jnp.float32)
        kernel = _tiled_kernel_f32 if acc_in_out else _tiled_kernel_acc
        scratch = [] if acc_in_out else [pltpu.VMEM((tm, tn), jnp.float32)]

        tile_est = (2 * tm * tk * x_sz + 2 * tn * tk * w_sz + 2 * tm * tn * o_sz
                    + 8 * tn * b_sz + (0 if acc_in_out else tm * tn * 4))
        vmem_limit = int(min(_VMEM_LIMIT_CAP, max(32 << 20, tile_est * 5 // 4)))
        flops = 2 * Mp * Np * Kp
        bytes_accessed = (Mp * Kp * x_sz * (Np // tn)
                          + Np * Kp * w_sz * (Mp // tm)
                          + Mp * Np * o_sz + Np * b_sz)

        out_p = pl.pallas_call(
            functools.partial(kernel, lr_mul=lr, precision=precision),
            out_shape=jax.ShapeDtypeStruct((Mp, Np), out_dtype),
            grid_spec=pltpu.PrefetchScalarGridSpec(
                num_scalar_prefetch=0,
                grid=grid,
                in_specs=[
                    pl.BlockSpec((tm, tk), lambda i, j, k: (i, k)),
                    pl.BlockSpec((tn, tk), lambda i, j, k: (j, k)),
                    pl.BlockSpec((1, tn), lambda i, j, k: (0, j)),
                ],
                out_specs=pl.BlockSpec((tm, tn), lambda i, j, k: (i, j)),
                scratch_shapes=scratch,
            ),
            compiler_params=pltpu.CompilerParams(
                dimension_semantics=("parallel", "parallel", "arbitrary"),
                vmem_limit_bytes=vmem_limit,
            ),
            cost_estimate=pl.CostEstimate(
                flops=int(flops), transcendentals=0, bytes_accessed=int(bytes_accessed)),
        )(x_p, w_p, b_p)

    out = out_p[:M, :N] if (Mp != M or Np != N) else out_p
    return out.reshape(*lead, N)


# ---------------------------------------------------------------------------
# Reference & self-test
# ---------------------------------------------------------------------------

def _reference(x, weight, bias, lr_mul=1.0):
    """f32, HIGHEST-precision ground truth for F.linear(x, W*lr_mul, b*lr_mul)."""
    x32 = x.astype(jnp.float32)
    w32 = weight.astype(jnp.float32)
    b32 = bias.astype(jnp.float32)
    return jnp.matmul(x32, (w32 * lr_mul).T,
                      precision=jax.lax.Precision.HIGHEST) + b32 * lr_mul


def _check(name, out, ref, tol):
    err = float(jnp.max(jnp.abs(out.astype(jnp.float32) - ref))
                / (float(jnp.max(jnp.abs(ref))) + 1e-6))
    if not err < tol:
        raise AssertionError(f"{name}: relative max error {err:.3e} exceeds {tol}")


if __name__ == "__main__":
    key = jax.random.PRNGKey(0)
    kx, kw, kb = jax.random.split(key, 3)
    lr_mul = 0.1

    # Typical EqualLinear (style-mapping) shape: small, but large enough to exercise Pallas.
    batch, in_dim, out_dim = 64, 256, 512
    x = jax.random.normal(kx, (batch, in_dim), dtype=jnp.float32)
    weight = jax.random.normal(kw, (out_dim, in_dim), dtype=jnp.float32)
    bias = 0.1 * jax.random.normal(kb, (out_dim,), dtype=jnp.float32)

    ref = _reference(x, weight, bias, lr_mul)

    # 1) Weight-resident single-axis Pallas path (default for this shape).
    out_res = jax.block_until_ready(equal_linear(x, weight, bias, lr_mul=lr_mul))
    assert out_res.shape == (batch, out_dim), out_res.shape
    _check("resident", out_res, ref, tol=2e-2)

    # 2) General tiled path, f32 output accumulated directly in the output block.
    out_tiled = jax.block_until_ready(
        equal_linear(x, weight, bias, lr_mul=lr_mul,
                     force_tiled=True, tm=64, tn=128, tk=128))
    _check("tiled_f32", out_tiled, ref, tol=2e-2)

    # 3) Tiled path with bf16 operands (f32 scratch accumulator, cast on store).
    out_bf16 = jax.block_until_ready(
        equal_linear(x.astype(jnp.bfloat16), weight.astype(jnp.bfloat16),
                     bias.astype(jnp.bfloat16), lr_mul=lr_mul,
                     force_tiled=True, tm=64, tn=128, tk=128))
    _check("tiled_bf16", out_bf16, ref, tol=5e-2)

    # 4) Tiny-problem fast path (bypasses Pallas: pure fixed overhead otherwise).
    x_t = jax.random.normal(kx, (2, 32), dtype=jnp.float32)
    w_t = jax.random.normal(kw, (32, 32), dtype=jnp.float32)
    b_t = 0.1 * jax.random.normal(kb, (32,), dtype=jnp.float32)
    out_t = jax.block_until_ready(equal_linear(x_t, w_t, b_t, lr_mul=lr_mul))
    assert out_t.shape == (2, 32), out_t.shape
    _check("tiny", out_t, _reference(x_t, w_t, b_t, lr_mul), tol=2e-2)

    print("KERNEL_OK")
</pallas_src>

<mosaic_0001>
module attributes {stable_mosaic.version = 11 : i64} {
  func.func @_resident_kernel(%arg0: i32, %arg1: memref<64x256xf32, #tpu.memory_space<vmem>>, %arg2: memref<512x256xf32, #tpu.memory_space<vmem>>, %arg3: memref<1x512xf32, #tpu.memory_space<vmem>>, %arg4: memref<64x512xf32, #tpu.memory_space<vmem>>) attributes {dimension_semantics = [#tpu.dimension_semantics<parallel>], iteration_bounds = array<i64: 1>, scalar_prefetch = 0 : i64, scratch_operands = 0 : i64, tpu.core_type = #tpu.core_type<tc>, window_params = [{transform_indices = @transform_0, window_bounds = array<i64: 64, 256>}, {pipeline_mode = #tpu.pipeline_mode<synchronous>, transform_indices = @transform_1, window_bounds = array<i64: 512, 256>}, {pipeline_mode = #tpu.pipeline_mode<synchronous>, transform_indices = @transform_2, window_bounds = array<i64: 1, 512>}, {transform_indices = @transform_3, window_bounds = array<i64: 64, 512>}]} {
    %c0 = arith.constant 0 : index
    %c0_0 = arith.constant 0 : index
    %0 = vector.load %arg1[%c0, %c0_0] : memref<64x256xf32, #tpu.memory_space<vmem>>, vector<64x256xf32>
    %c0_1 = arith.constant 0 : index
    %c0_2 = arith.constant 0 : index
    %1 = vector.load %arg2[%c0_1, %c0_2] : memref<512x256xf32, #tpu.memory_space<vmem>>, vector<512x256xf32>
    %cst = arith.constant dense<0.000000e+00> : vector<64x512xf32>
    %2 = tpu.matmul %0, %1, %cst {dimension_numbers = #tpu.dot_dimension_numbers<[1], [1], [0], [0], [0, 0, 1, 0], [], []>} : vector<64x256xf32>, vector<512x256xf32>, vector<64x512xf32> -> vector<64x512xf32>
    %c0_3 = arith.constant 0 : index
    %c0_4 = arith.constant 0 : index
    %3 = vector.load %arg3[%c0_3, %c0_4] : memref<1x512xf32, #tpu.memory_space<vmem>>, vector<1x512xf32>
    %4 = vector.broadcast %3 : vector<1x512xf32> to vector<64x512xf32>
    %5 = arith.addf %2, %4 : vector<64x512xf32>
    %cst_5 = arith.constant 1.000000e-01 : f32
    %6 = vector.broadcast %cst_5 : f32 to vector<64x512xf32>
    %7 = arith.mulf %5, %6 : vector<64x512xf32>
    %c0_6 = arith.constant 0 : index
    %c0_7 = arith.constant 0 : index
    %8 = vector.load %arg4[%c0_6, %c0_7] : memref<64x512xf32, #tpu.memory_space<vmem>>, vector<64x512xf32>
    tpu.vector_store %arg4[%c0_6, %c0_7], %7 {strides = array<i32>} : memref<64x512xf32, #tpu.memory_space<vmem>>, vector<64x512xf32>,
    return
  }
  func.func @transform_0(%arg0: i32) -> (i32, i32) {
    %c0_i32 = arith.constant 0 : i32
    %c0_i32_0 = arith.constant 0 : i32
    return %arg0, %c0_i32 : i32, i32
  }
  func.func @transform_1(%arg0: i32) -> (i32, i32) {
    %c0_i32 = arith.constant 0 : i32
    %c0_i32_0 = arith.constant 0 : i32
    %c0_i32_1 = arith.constant 0 : i32
    return %c0_i32, %c0_i32_0 : i32, i32
  }
  func.func @transform_2(%arg0: i32) -> (i32, i32) {
    %c0_i32 = arith.constant 0 : i32
    %c0_i32_0 = arith.constant 0 : i32
    %c0_i32_1 = arith.constant 0 : i32
    return %c0_i32, %c0_i32_0 : i32, i32
  }
  func.func @transform_3(%arg0: i32) -> (i32, i32) {
    %c0_i32 = arith.constant 0 : i32
    %c0_i32_0 = arith.constant 0 : i32
    return %arg0, %c0_i32 : i32, i32
  }
}

</mosaic_0001>

<llo_original>
// kernel: tpu_custom_call.1
$region0: #{tpu_custom_call.1}
  #allocation0 [shape = 'u32[]', space=smem, size = 0x4, offset = 0x4, fixed_abs, tag = 'smem constant byte address 0x4 - core index']
  #allocation1 [shape = 'u32[72,128]{1,0:T(1,128)}', space=vmem, size = 0x9000, scoped, tag = 'internal scratch']
  %s0 = inlined_call_operand.hbm [shape: f32[64,256], index: 0, kind: input, shape index: {}]
  %s1 = inlined_call_operand.hbm [shape: f32[512,256], index: 1, kind: input, shape index: {}]
  %s2 = inlined_call_operand.hbm [shape: f32[1,512], index: 2, kind: input, shape index: {}]
  %s3 = inlined_call_operand.hbm [shape: f32[64,512], index: 3, kind: output, shape index: {}]
  %s4 = sld [smem:[#allocation0]]
  $region34: #{tpu_custom_call.1} parent=0
    _
  %s6 = ssub.s32 1, %s4
  %s7 = scalar_select 0, %s6, %s4
  $region1: #{tpu_custom_call.1} parent=0
    #allocation2 [shape = 'u8[65536]{0}', space=vmem, size = 0x10000, scoped, tag = 'input window, operand 0, single buffered']
    #allocation3 [shape = 's32[1]{0}', space=sflag, size = 0x4, scoped, tag = 'scoped memory for tpu_custom_call.1']
    #allocation4 [shape = 's32[1]{0}', space=sflag, size = 0x4, scoped, tag = 'scoped memory for tpu_custom_call.1']
    #allocation5 [shape = 'u8[524288]{0}', space=vmem, size = 0x80000, scoped, tag = 'input window, operand 1, single buffered']
    #allocation6 [shape = 's32[1]{0}', space=sflag, size = 0x4, scoped, tag = 'scoped memory for tpu_custom_call.1']
    #allocation7 [shape = 'u8[2048]{0}', space=vmem, size = 0x800, scoped, tag = 'input window, operand 2, single buffered']
    #allocation8 [shape = 'u8[131072]{0}', space=vmem, size = 0x20000, scoped, tag = 'output window, operand 0, single buffered']
    %8 = vsyncpa [#allocation3], 0
    %9 = vsyncpa [#allocation6], 0
    %10 = vsyncpa [#allocation4], 0
    // Predicated region
    $region2: #{tpu_custom_call.1} parent=1 // pred_check
      _
    $region3: #{tpu_custom_call.1} parent=1 // pred_check_branch
      %12 = sbr.rel (0) target = $region5
    $region4: #{tpu_custom_call.1} parent=1 // pred_region
      %14 = vsyncadd [#allocation3], 0
      %s15 = sshll.u32 %s0, 4
      %s16 = int_to_ptr.hbm [resolvable:$true] %s15
      %s17 = sshll.u32 [#allocation2], 4
      %s18 = int_to_ptr.vmem [resolvable:$true] %s17
      %23 = dma.hbm_to_vmem [thread:$0]  %s16, 2048, %s18, [#allocation3], 256, 256, 16
    $region5: #{tpu_custom_call.1} parent=1 // pred_fallthru
      _
    // Predicated region
    $region6: #{tpu_custom_call.1} parent=1 // pred_check
      _
    $region7: #{tpu_custom_call.1} parent=1 // pred_check_branch
      %25 = sbr.rel (0) target = $region9
    $region8: #{tpu_custom_call.1} parent=1 // pred_region
      %27 = vsyncadd [#allocation6], 0
      %s28 = sshll.u32 %s1, 4
      %s29 = int_to_ptr.hbm [resolvable:$true] %s28
      %s30 = sshll.u32 [#allocation5], 4
      %s31 = int_to_ptr.vmem [resolvable:$true] %s30
      %36 = dma.hbm_to_vmem [thread:$0]  %s29, 16384, %s31, [#allocation6], 256, 256, 16
    $region9: #{tpu_custom_call.1} parent=1 // pred_fallthru
      _
    // Predicated region
    $region10: #{tpu_custom_call.1} parent=1 // pred_check
      _
    $region11: #{tpu_custom_call.1} parent=1 // pred_check_branch
      %38 = sbr.rel (0) target = $region13
    $region12: #{tpu_custom_call.1} parent=1 // pred_region
      %40 = vsyncadd [#allocation6], 0
      %s42 = sshll.u32 %s2, 4
      %s43 = int_to_ptr.hbm [resolvable:$true] %s42
      %s44 = sshll.u32 [#allocation7], 4
      %s45 = int_to_ptr.vmem [resolvable:$true] %s44
      %47 = dma.hbm_to_vmem [thread:$0]  %s43, 64, %s45, [#allocation6]
    $region13: #{tpu_custom_call.1} parent=1 // pred_fallthru
      _
    // Predicated region
    $region14: #{tpu_custom_call.1} parent=1 // pred_check
      _
    $region15: #{tpu_custom_call.1} parent=1 // pred_check_branch
      %49 = sbr.rel (0) target = $region17
    $region16: #{tpu_custom_call.1} parent=1 // pred_region
      %51 = dma.done [#allocation3], 2048
    $region17: #{tpu_custom_call.1} parent=1 // pred_fallthru
      _
    // Predicated region
    $region18: #{tpu_custom_call.1} parent=1 // pred_check
      _
    $region19: #{tpu_custom_call.1} parent=1 // pred_check_branch
      %53 = sbr.rel (0) target = $region21
    $region20: #{tpu_custom_call.1} parent=1 // pred_region
      %55 = dma.done [#allocation6], 16384
    $region21: #{tpu_custom_call.1} parent=1 // pred_fallthru
      _
    // Predicated region
    $region22: #{tpu_custom_call.1} parent=1 // pred_check
      _
    $region23: #{tpu_custom_call.1} parent=1 // pred_check_branch
      %57 = sbr.rel (0) target = $region25
    $region24: #{tpu_custom_call.1} parent=1 // pred_region
      %59 = dma.done [#allocation6], 64
    $region25: #{tpu_custom_call.1} parent=1 // pred_fallthru
      _
    %v60 = vld [vmem:[#allocation2] sm:$0xff]
    %v61 = vld [vmem:[#allocation2 + $0x8] sm:$0xff]
    %v62 = vld [vmem:[#allocation2 + $0x10] sm:$0xff]
    %v63 = vld [vmem:[#allocation2 + $0x18] sm:$0xff]
    %v64 = vld [vmem:[#allocation2 + $0x20] sm:$0xff]
    %v65 = vld [vmem:[#allocation2 + $0x28] sm:$0xff]
    %v66 = vld [vmem:[#allocation2 + $0x30] sm:$0xff]
    %v67 = vld [vmem:[#allocation2 + $0x38] sm:$0xff]
    %v68 = vld [vmem:[#allocation2 + $0x40] sm:$0xff]
    %v69 = vld [vmem:[#allocation2 + $0x48] sm:$0xff]
    %v70 = vld [vmem:[#allocation2 + $0x50] sm:$0xff]
    %v71 = vld [vmem:[#allocation2 + $0x58] sm:$0xff]
    %v72 = vld [vmem:[#allocation2 + $0x60] sm:$0xff]
    %v73 = vld [vmem:[#allocation2 + $0x68] sm:$0xff]
    %v74 = vld [vmem:[#allocation2 + $0x70] sm:$0xff]
    %v75 = vld [vmem:[#allocation2 + $0x78] sm:$0xff]
    %v76 = vld [vmem:[#allocation5] sm:$0xff]
    %v77 = vld [vmem:[#allocation5 + $0x8] sm:$0xff]
    %v78 = vld [vmem:[#allocation5 + $0x10] sm:$0xff]
    %v79 = vld [vmem:[#allocation5 + $0x18] sm:$0xff]
    %v80 = vld [vmem:[#allocation5 + $0x20] sm:$0xff]
    %v81 = vld [vmem:[#allocation5 + $0x28] sm:$0xff]
    %v82 = vld [vmem:[#allocation5 + $0x30] sm:$0xff]
    %v83 = vld [vmem:[#allocation5 + $0x38] sm:$0xff]
    %v84 = vld [vmem:[#allocation5 + $0x40] sm:$0xff]
    %v85 = vld [vmem:[#allocation5 + $0x48] sm:$0xff]
    %v86 = vld [vmem:[#allocation5 + $0x50] sm:$0xff]
    %v87 = vld [vmem:[#allocation5 + $0x58] sm:$0xff]
    %v88 = vld [vmem:[#allocation5 + $0x60] sm:$0xff]
    %v89 = vld [vmem:[#allocation5 + $0x68] sm:$0xff]
    %v90 = vld [vmem:[#allocation5 + $0x70] sm:$0xff]
    %v91 = vld [vmem:[#allocation5 + $0x78] sm:$0xff]
    %v92 = vld [vmem:[#allocation5 + $0x80] sm:$0xff]
    %v93 = vld [vmem:[#allocation5 + $0x88] sm:$0xff]
    %v94 = vld [vmem:[#allocation5 + $0x90] sm:$0xff]
    %v95 = vld [vmem:[#allocation5 + $0x98] sm:$0xff]
    %v96 = vld [vmem:[#allocation5 + $0xa0] sm:$0xff]
    %v97 = vld [vmem:[#allocation5 + $0xa8] sm:$0xff]
    %v98 = vld [vmem:[#allocation5 + $0xb0] sm:$0xff]
    %v99 = vld [vmem:[#allocation5 + $0xb8] sm:$0xff]
    %v100 = vld [vmem:[#allocation5 + $0xc0] sm:$0xff]
    %v101 = vld [vmem:[#allocation5 + $0xc8] sm:$0xff]
    %v102 = vld [vmem:[#allocation5 + $0xd0] sm:$0xff]
    %v103 = vld [vmem:[#allocation5 + $0xd8] sm:$0xff]
    %v104 = vld [vmem:[#allocation5 + $0xe0] sm:$0xff]
    %v105 = vld [vmem:[#allocation5 + $0xe8] sm:$0xff]
    %v106 = vld [vmem:[#allocation5 + $0xf0] sm:$0xff]
    %v107 = vld [vmem:[#allocation5 + $0xf8] sm:$0xff]
    %v108 = vld [vmem:[#allocation5 + $0x100] sm:$0xff]
    %v109 = vld [vmem:[#allocation5 + $0x108] sm:$0xff]
    %v110 = vld [vmem:[#allocation5 + $0x110] sm:$0xff]
    %v111 = vld [vmem:[#allocation5 + $0x118] sm:$0xff]
    %v112 = vld [vmem:[#allocation5 + $0x120] sm:$0xff]
    %v113 = vld [vmem:[#allocation5 + $0x128] sm:$0xff]
    %v114 = vld [vmem:[#allocation5 + $0x130] sm:$0xff]
    %v115 = vld [vmem:[#allocation5 + $0x138] sm:$0xff]
    %v116 = vld [vmem:[#allocation5 + $0x140] sm:$0xff]
    %v117 = vld [vmem:[#allocation5 + $0x148] sm:$0xff]
    %v118 = vld [vmem:[#allocation5 + $0x150] sm:$0xff]
    %v119 = vld [vmem:[#allocation5 + $0x158] sm:$0xff]
    %v120 = vld [vmem:[#allocation5 + $0x160] sm:$0xff]
    %v121 = vld [vmem:[#allocation5 + $0x168] sm:$0xff]
    %v122 = vld [vmem:[#allocation5 + $0x170] sm:$0xff]
    %v123 = vld [vmem:[#allocation5 + $0x178] sm:$0xff]
    %v124 = vld [vmem:[#allocation5 + $0x180] sm:$0xff]
    %v125 = vld [vmem:[#allocation5 + $0x188] sm:$0xff]
    %v126 = vld [vmem:[#allocation5 + $0x190] sm:$0xff]
    %v127 = vld [vmem:[#allocation5 + $0x198] sm:$0xff]
    %v128 = vld [vmem:[#allocation5 + $0x1a0] sm:$0xff]
    %v129 = vld [vmem:[#allocation5 + $0x1a8] sm:$0xff]
    %v130 = vld [vmem:[#allocation5 + $0x1b0] sm:$0xff]
    %v131 = vld [vmem:[#allocation5 + $0x1b8] sm:$0xff]
    %v132 = vld [vmem:[#allocation5 + $0x1c0] sm:$0xff]
    %v133 = vld [vmem:[#allocation5 + $0x1c8] sm:$0xff]
    %v134 = vld [vmem:[#allocation5 + $0x1d0] sm:$0xff]
    %v135 = vld [vmem:[#allocation5 + $0x1d8] sm:$0xff]
    %v136 = vld [vmem:[#allocation5 + $0x1e0] sm:$0xff]
    %v137 = vld [vmem:[#allocation5 + $0x1e8] sm:$0xff]
    %v138 = vld [vmem:[#allocation5 + $0x1f0] sm:$0xff]
    %v139 = vld [vmem:[#allocation5 + $0x1f8] sm:$0xff]
    %v140 = vld [vmem:[#allocation5 + $0x200] sm:$0xff]
    %v141 = vld [vmem:[#allocation5 + $0x208] sm:$0xff]
    %v142 = vld [vmem:[#allocation5 + $0x210] sm:$0xff]
    %v143 = vld [vmem:[#allocation5 + $0x218] sm:$0xff]
    %v144 = vld [vmem:[#allocation5 + $0x220] sm:$0xff]
    %v145 = vld [vmem:[#allocation5 + $0x228] sm:$0xff]
    %v146 = vld [vmem:[#allocation5 + $0x230] sm:$0xff]
    %v147 = vld [vmem:[#allocation5 + $0x238] sm:$0xff]
    %v148 = vld [vmem:[#allocation5 + $0x240] sm:$0xff]
    %v149 = vld [vmem:[#allocation5 + $0x248] sm:$0xff]
    %v150 = vld [vmem:[#allocation5 + $0x250] sm:$0xff]
    %v151 = vld [vmem:[#allocation5 + $0x258] sm:$0xff]
    %v152 = vld [vmem:[#allocation5 + $0x260] sm:$0xff]
    %v153 = vld [vmem:[#allocation5 + $0x268] sm:$0xff]
    %v154 = vld [vmem:[#allocation5 + $0x270] sm:$0xff]
    %v155 = vld [vmem:[#allocation5 + $0x278] sm:$0xff]
    %v156 = vld [vmem:[#allocation5 + $0x280] sm:$0xff]
    %v157 = vld [vmem:[#allocation5 + $0x288] sm:$0xff]
    %v158 = vld [vmem:[#allocation5 + $0x290] sm:$0xff]
    %v159 = vld [vmem:[#allocation5 + $0x298] sm:$0xff]
    %v160 = vld [vmem:[#allocation5 + $0x2a0] sm:$0xff]
    %v161 = vld [vmem:[#allocation5 + $0x2a8] sm:$0xff]
    %v162 = vld [vmem:[#allocation5 + $0x2b0] sm:$0xff]
    %v163 = vld [vmem:[#allocation5 + $0x2b8] sm:$0xff]
    %v164 = vld [vmem:[#allocation5 + $0x2c0] sm:$0xff]
    %v165 = vld [vmem:[#allocation5 + $0x2c8] sm:$0xff]
    %v166 = vld [vmem:[#allocation5 + $0x2d0] sm:$0xff]
    %v167 = vld [vmem:[#allocation5 + $0x2d8] sm:$0xff]
    %v168 = vld [vmem:[#allocation5 + $0x2e0] sm:$0xff]
    %v169 = vld [vmem:[#allocation5 + $0x2e8] sm:$0xff]
    %v170 = vld [vmem:[#allocation5 + $0x2f0] sm:$0xff]
    %v171 = vld [vmem:[#allocation5 + $0x2f8] sm:$0xff]
    %v172 = vld [vmem:[#allocation5 + $0x300] sm:$0xff]
    %v173 = vld [vmem:[#allocation5 + $0x308] sm:$0xff]
    %v174 = vld [vmem:[#allocation5 + $0x310] sm:$0xff]
    %v175 = vld [vmem:[#allocation5 + $0x318] sm:$0xff]
    %v176 = vld [vmem:[#allocation5 + $0x320] sm:$0xff]
    %v177 = vld [vmem:[#allocation5 + $0x328] sm:$0xff]
    %v178 = vld [vmem:[#allocation5 + $0x330] sm:$0xff]
    %v179 = vld [vmem:[#allocation5 + $0x338] sm:$0xff]
    %v180 = vld [vmem:[#allocation5 + $0x340] sm:$0xff]
    %v181 = vld [vmem:[#allocation5 + $0x348] sm:$0xff]
    %v182 = vld [vmem:[#allocation5 + $0x350] sm:$0xff]
    %v183 = vld [vmem:[#allocation5 + $0x358] sm:$0xff]
    %v184 = vld [vmem:[#allocation5 + $0x360] sm:$0xff]
    %v185 = vld [vmem:[#allocation5 + $0x368] sm:$0xff]
    %v186 = vld [vmem:[#allocation5 + $0x370] sm:$0xff]
    %v187 = vld [vmem:[#allocation5 + $0x378] sm:$0xff]
    %v188 = vld [vmem:[#allocation5 + $0x380] sm:$0xff]
    %v189 = vld [vmem:[#allocation5 + $0x388] sm:$0xff]
    %v190 = vld [vmem:[#allocation5 + $0x390] sm:$0xff]
    %v191 = vld [vmem:[#allocation5 + $0x398] sm:$0xff]
    %v192 = vld [vmem:[#allocation5 + $0x3a0] sm:$0xff]
    %v193 = vld [vmem:[#allocation5 + $0x3a8] sm:$0xff]
    %v194 = vld [vmem:[#allocation5 + $0x3b0] sm:$0xff]
    %v195 = vld [vmem:[#allocation5 + $0x3b8] sm:$0xff]
    %v196 = vld [vmem:[#allocation5 + $0x3c0] sm:$0xff]
    %v197 = vld [vmem:[#allocation5 + $0x3c8] sm:$0xff]
    %v198 = vld [vmem:[#allocation5 + $0x3d0] sm:$0xff]
    %v199 = vld [vmem:[#allocation5 + $0x3d8] sm:$0xff]
    %v200 = vld [vmem:[#allocation5 + $0x3e0] sm:$0xff]
    %v201 = vld [vmem:[#allocation5 + $0x3e8] sm:$0xff]
    %v202 = vld [vmem:[#allocation5 + $0x3f0] sm:$0xff]
    %v203 = vld [vmem:[#allocation5 + $0x3f8] sm:$0xff]
    %v204 = vld [vmem:[#allocation7] sm:$0xf]
    %v206 = vperm.slane %v204, 0
    %v207 = vperm.slane %v204, 1
    %v208 = vperm.slane %v204, 2
    %v209 = vperm.slane %v204, 3
    %214 = vmatpush.xpose.msra.mxu0 %v106
    %215 = vmatpush.xpose.msra.mxu0 %v104
    %216 = vmatpush.xpose.msra.mxu0 %v102
    %217 = vmatpush.xpose.msra.mxu0 %v100
    %218 = vmatpush.xpose.msra.mxu0 %v98
    %219 = vmatpush.xpose.msra.mxu0 %v96
    %220 = vmatpush.xpose.msra.mxu0 %v94
    %221 = vmatpush.xpose.msra.mxu0 %v92
    %222 = vmatpush.xpose.msra.mxu0 %v90
    %223 = vmatpush.xpose.msra.mxu0 %v88
    %224 = vmatpush.xpose.msra.mxu0 %v86
    %225 = vmatpush.xpose.msra.mxu0 %v84
    %226 = vmatpush.xpose.msra.mxu0 %v82
    %227 = vmatpush.xpose.msra.mxu0 %v80
    %228 = vmatpush.xpose.msra.mxu0 %v78
    %229 = vmatpush.xpose.msra.mxu0 %v76
    %230 = vmatmul.f32.gmra.mxu0 %v60
    %v231 = vpop.f32.mrf.mxu0
    %v232 = vadd.f32 %v206, %v231
    %233 = vmatmul.f32.gmra.mxu0 %v62
    %v234 = vpop.f32.mrf.mxu0
    %v235 = vadd.f32 %v206, %v234
    %236 = vmatmul.f32.gmra.mxu0 %v64
    %v237 = vpop.f32.mrf.mxu0
    %v238 = vadd.f32 %v206, %v237
    %239 = vmatmul.f32.gmra.mxu0 %v66
    %v240 = vpop.f32.mrf.mxu0
    %v241 = vadd.f32 %v206, %v240
    %242 = vmatmul.f32.gmra.mxu0 %v68
    %v243 = vpop.f32.mrf.mxu0
    %v244 = vadd.f32 %v206, %v243
    %245 = vmatmul.f32.gmra.mxu0 %v70
    %v246 = vpop.f32.mrf.mxu0
    %v247 = vadd.f32 %v206, %v246
    %248 = vmatmul.f32.gmra.mxu0 %v72
    %v249 = vpop.f32.mrf.mxu0
    %v250 = vadd.f32 %v206, %v249
    %251 = vmatmul.f32.gmra.mxu0 %v74
    %v252 = vpop.f32.mrf.mxu0
    %v253 = vadd.f32 %v206, %v252
    %254 = vdwg.mxu0
    %255 = vmatpush.xpose.msra.mxu0 %v107
    %256 = vmatpush.xpose.msra.mxu0 %v105
    %257 = vmatpush.xpose.msra.mxu0 %v103
    %258 = vmatpush.xpose.msra.mxu0 %v101
    %259 = vmatpush.xpose.msra.mxu0 %v99
    %260 = vmatpush.xpose.msra.mxu0 %v97
    %261 = vmatpush.xpose.msra.mxu0 %v95
    %262 = vmatpush.xpose.msra.mxu0 %v93
    %263 = vmatpush.xpose.msra.mxu0 %v91
    %264 = vmatpush.xpose.msra.mxu0 %v89
    %265 = vmatpush.xpose.msra.mxu0 %v87
    %266 = vmatpush.xpose.msra.mxu0 %v85
    %267 = vmatpush.xpose.msra.mxu0 %v83
    %268 = vmatpush.xpose.msra.mxu0 %v81
    %269 = vmatpush.xpose.msra.mxu0 %v79
    %270 = vmatpush.xpose.msra.mxu0 %v77
    %271 = vmatmul.f32.gmra.mxu0 %v61
    %v272 = vpop.f32.mrf.mxu0
    %v273 = vadd.f32 %v232, %v272
    %274 = vmatmul.f32.gmra.mxu0 %v63
    %v275 = vpop.f32.mrf.mxu0
    %v276 = vadd.f32 %v235, %v275
    %277 = vmatmul.f32.gmra.mxu0 %v65
    %v278 = vpop.f32.mrf.mxu0
    %v279 = vadd.f32 %v238, %v278
    %280 = vmatmul.f32.gmra.mxu0 %v67
    %v281 = vpop.f32.mrf.mxu0
    %v282 = vadd.f32 %v241, %v281
    %283 = vmatmul.f32.gmra.mxu0 %v69
    %v284 = vpop.f32.mrf.mxu0
    %v285 = vadd.f32 %v244, %v284
    %286 = vmatmul.f32.gmra.mxu0 %v71
    %v287 = vpop.f32.mrf.mxu0
    %v288 = vadd.f32 %v247, %v287
    %289 = vmatmul.f32.gmra.mxu0 %v73
    %v290 = vpop.f32.mrf.mxu0
    %v291 = vadd.f32 %v250, %v290
    %292 = vmatmul.f32.gmra.mxu0 %v75
    %v293 = vpop.f32.mrf.mxu0
    %v294 = vadd.f32 %v253, %v293
    %295 = vdwg.mxu0
    %296 = vmatpush.xpose.msra.mxu0 %v138
    %297 = vmatpush.xpose.msra.mxu0 %v136
    %298 = vmatpush.xpose.msra.mxu0 %v134
    %299 = vmatpush.xpose.msra.mxu0 %v132
    %300 = vmatpush.xpose.msra.mxu0 %v130
    %301 = vmatpush.xpose.msra.mxu0 %v128
    %302 = vmatpush.xpose.msra.mxu0 %v126
    %303 = vmatpush.xpose.msra.mxu0 %v124
    %304 = vmatpush.xpose.msra.mxu0 %v122
    %305 = vmatpush.xpose.msra.mxu0 %v120
    %306 = vmatpush.xpose.msra.mxu0 %v118
    %307 = vmatpush.xpose.msra.mxu0 %v116
    %308 = vmatpush.xpose.msra.mxu0 %v114
    %309 = vmatpush.xpose.msra.mxu0 %v112
    %310 = vmatpush.xpose.msra.mxu0 %v110
    %311 = vmatpush.xpose.msra.mxu0 %v108
    %312 = vmatmul.f32.gmra.mxu0 %v60
    %v313 = vpop.f32.mrf.mxu0
    %v314 = vadd.f32 %v207, %v313
    %315 = vmatmul.f32.gmra.mxu0 %v62
    %v316 = vpop.f32.mrf.mxu0
    %v317 = vadd.f32 %v207, %v316
    %318 = vmatmul.f32.gmra.mxu0 %v64
    %v319 = vpop.f32.mrf.mxu0
    %v320 = vadd.f32 %v207, %v319
    %321 = vmatmul.f32.gmra.mxu0 %v66
    %v322 = vpop.f32.mrf.mxu0
    %v323 = vadd.f32 %v207, %v322
    %324 = vmatmul.f32.gmra.mxu0 %v68
    %v325 = vpop.f32.mrf.mxu0
    %v326 = vadd.f32 %v207, %v325
    %327 = vmatmul.f32.gmra.mxu0 %v70
    %v328 = vpop.f32.mrf.mxu0
    %v329 = vadd.f32 %v207, %v328
    %330 = vmatmul.f32.gmra.mxu0 %v72
    %v331 = vpop.f32.mrf.mxu0
    %v332 = vadd.f32 %v207, %v331
    %333 = vmatmul.f32.gmra.mxu0 %v74
    %v334 = vpop.f32.mrf.mxu0
    %v335 = vadd.f32 %v207, %v334
    %336 = vdwg.mxu0
    %337 = vmatpush.xpose.msra.mxu0 %v139
    %338 = vmatpush.xpose.msra.mxu0 %v137
    %339 = vmatpush.xpose.msra.mxu0 %v135
    %340 = vmatpush.xpose.msra.mxu0 %v133
    %341 = vmatpush.xpose.msra.mxu0 %v131
    %342 = vmatpush.xpose.msra.mxu0 %v129
    %343 = vmatpush.xpose.msra.mxu0 %v127
    %344 = vmatpush.xpose.msra.mxu0 %v125
    %345 = vmatpush.xpose.msra.mxu0 %v123
    %346 = vmatpush.xpose.msra.mxu0 %v121
    %347 = vmatpush.xpose.msra.mxu0 %v119
    %348 = vmatpush.xpose.msra.mxu0 %v117
    %349 = vmatpush.xpose.msra.mxu0 %v115
    %350 = vmatpush.xpose.msra.mxu0 %v113
    %351 = vmatpush.xpose.msra.mxu0 %v111
    %352 = vmatpush.xpose.msra.mxu0 %v109
    %353 = vmatmul.f32.gmra.mxu0 %v61
    %v354 = vpop.f32.mrf.mxu0
    %v355 = vadd.f32 %v314, %v354
    %356 = vmatmul.f32.gmra.mxu0 %v63
    %v357 = vpop.f32.mrf.mxu0
    %v358 = vadd.f32 %v317, %v357
    %359 = vmatmul.f32.gmra.mxu0 %v65
    %v360 = vpop.f32.mrf.mxu0
    %v361 = vadd.f32 %v320, %v360
    %362 = vmatmul.f32.gmra.mxu0 %v67
    %v363 = vpop.f32.mrf.mxu0
    %v364 = vadd.f32 %v323, %v363
    %365 = vmatmul.f32.gmra.mxu0 %v69
    %v366 = vpop.f32.mrf.mxu0
    %v367 = vadd.f32 %v326, %v366
    %368 = vmatmul.f32.gmra.mxu0 %v71
    %v369 = vpop.f32.mrf.mxu0
    %v370 = vadd.f32 %v329, %v369
    %371 = vmatmul.f32.gmra.mxu0 %v73
    %v372 = vpop.f32.mrf.mxu0
    %v373 = vadd.f32 %v332, %v372
    %374 = vmatmul.f32.gmra.mxu0 %v75
    %v375 = vpop.f32.mrf.mxu0
    %v376 = vadd.f32 %v335, %v375
    %377 = vdwg.mxu0
    %378 = vmatpush.xpose.msra.mxu0 %v170
    %379 = vmatpush.xpose.msra.mxu0 %v168
    %380 = vmatpush.xpose.msra.mxu0 %v166
    %381 = vmatpush.xpose.msra.mxu0 %v164
    %382 = vmatpush.xpose.msra.mxu0 %v162
    %383 = vmatpush.xpose.msra.mxu0 %v160
    %384 = vmatpush.xpose.msra.mxu0 %v158
    %385 = vmatpush.xpose.msra.mxu0 %v156
    %386 = vmatpush.xpose.msra.mxu0 %v154
    %387 = vmatpush.xpose.msra.mxu0 %v152
    %388 = vmatpush.xpose.msra.mxu0 %v150
    %389 = vmatpush.xpose.msra.mxu0 %v148
    %390 = vmatpush.xpose.msra.mxu0 %v146
    %391 = vmatpush.xpose.msra.mxu0 %v144
    %392 = vmatpush.xpose.msra.mxu0 %v142
    %393 = vmatpush.xpose.msra.mxu0 %v140
    %394 = vmatmul.f32.gmra.mxu0 %v60
    %v395 = vpop.f32.mrf.mxu0
    %v396 = vadd.f32 %v208, %v395
    %397 = vmatmul.f32.gmra.mxu0 %v62
    %v398 = vpop.f32.mrf.mxu0
    %v399 = vadd.f32 %v208, %v398
    %400 = vmatmul.f32.gmra.mxu0 %v64
    %v401 = vpop.f32.mrf.mxu0
    %v402 = vadd.f32 %v208, %v401
    %403 = vmatmul.f32.gmra.mxu0 %v66
    %v404 = vpop.f32.mrf.mxu0
    %v405 = vadd.f32 %v208, %v404
    %406 = vmatmul.f32.gmra.mxu0 %v68
    %v407 = vpop.f32.mrf.mxu0
    %v408 = vadd.f32 %v208, %v407
    %409 = vmatmul.f32.gmra.mxu0 %v70
    %v410 = vpop.f32.mrf.mxu0
    %v411 = vadd.f32 %v208, %v410
    %412 = vmatmul.f32.gmra.mxu0 %v72
    %v413 = vpop.f32.mrf.mxu0
    %v414 = vadd.f32 %v208, %v413
    %415 = vmatmul.f32.gmra.mxu0 %v74
    %v416 = vpop.f32.mrf.mxu0
    %v417 = vadd.f32 %v208, %v416
    %418 = vdwg.mxu0
    %419 = vmatpush.xpose.msra.mxu0 %v171
    %420 = vmatpush.xpose.msra.mxu0 %v169
    %421 = vmatpush.xpose.msra.mxu0 %v167
    %422 = vmatpush.xpose.msra.mxu0 %v165
    %423 = vmatpush.xpose.msra.mxu0 %v163
    %424 = vmatpush.xpose.msra.mxu0 %v161
    %425 = vmatpush.xpose.msra.mxu0 %v159
    %426 = vmatpush.xpose.msra.mxu0 %v157
    %427 = vmatpush.xpose.msra.mxu0 %v155
    %428 = vmatpush.xpose.msra.mxu0 %v153
    %429 = vmatpush.xpose.msra.mxu0 %v151
    %430 = vmatpush.xpose.msra.mxu0 %v149
    %431 = vmatpush.xpose.msra.mxu0 %v147
    %432 = vmatpush.xpose.msra.mxu0 %v145
    %433 = vmatpush.xpose.msra.mxu0 %v143
    %434 = vmatpush.xpose.msra.mxu0 %v141
    %435 = vmatmul.f32.gmra.mxu0 %v61
    %v436 = vpop.f32.mrf.mxu0
    %v437 = vadd.f32 %v396, %v436
    %438 = vmatmul.f32.gmra.mxu0 %v63
    %v439 = vpop.f32.mrf.mxu0
    %v440 = vadd.f32 %v399, %v439
    %441 = vmatmul.f32.gmra.mxu0 %v65
    %v442 = vpop.f32.mrf.mxu0
    %v443 = vadd.f32 %v402, %v442
    %444 = vmatmul.f32.gmra.mxu0 %v67
    %v445 = vpop.f32.mrf.mxu0
    %v446 = vadd.f32 %v405, %v445
    %447 = vmatmul.f32.gmra.mxu0 %v69
    %v448 = vpop.f32.mrf.mxu0
    %v449 = vadd.f32 %v408, %v448
    %450 = vmatmul.f32.gmra.mxu0 %v71
    %v451 = vpop.f32.mrf.mxu0
    %v452 = vadd.f32 %v411, %v451
    %453 = vmatmul.f32.gmra.mxu0 %v73
    %v454 = vpop.f32.mrf.mxu0
    %v455 = vadd.f32 %v414, %v454
    %456 = vmatmul.f32.gmra.mxu0 %v75
    %v457 = vpop.f32.mrf.mxu0
    %v458 = vadd.f32 %v417, %v457
    %459 = vdwg.mxu0
    %460 = vmatpush.xpose.msra.mxu0 %v202
    %461 = vmatpush.xpose.msra.mxu0 %v200
    %462 = vmatpush.xpose.msra.mxu0 %v198
    %463 = vmatpush.xpose.msra.mxu0 %v196
    %464 = vmatpush.xpose.msra.mxu0 %v194
    %465 = vmatpush.xpose.msra.mxu0 %v192
    %466 = vmatpush.xpose.msra.mxu0 %v190
    %467 = vmatpush.xpose.msra.mxu0 %v188
    %468 = vmatpush.xpose.msra.mxu0 %v186
    %469 = vmatpush.xpose.msra.mxu0 %v184
    %470 = vmatpush.xpose.msra.mxu0 %v182
    %471 = vmatpush.xpose.msra.mxu0 %v180
    %472 = vmatpush.xpose.msra.mxu0 %v178
    %473 = vmatpush.xpose.msra.mxu0 %v176
    %474 = vmatpush.xpose.msra.mxu0 %v174
    %475 = vmatpush.xpose.msra.mxu0 %v172
    %476 = vmatmul.f32.gmra.mxu0 %v60
    %v477 = vpop.f32.mrf.mxu0
    %v478 = vadd.f32 %v209, %v477
    %479 = vmatmul.f32.gmra.mxu0 %v62
    %v480 = vpop.f32.mrf.mxu0
    %v481 = vadd.f32 %v209, %v480
    %482 = vmatmul.f32.gmra.mxu0 %v64
    %v483 = vpop.f32.mrf.mxu0
    %v484 = vadd.f32 %v209, %v483
    %485 = vmatmul.f32.gmra.mxu0 %v66
    %v486 = vpop.f32.mrf.mxu0
    %v487 = vadd.f32 %v209, %v486
    %488 = vmatmul.f32.gmra.mxu0 %v68
    %v489 = vpop.f32.mrf.mxu0
    %v490 = vadd.f32 %v209, %v489
    %491 = vmatmul.f32.gmra.mxu0 %v70
    %v492 = vpop.f32.mrf.mxu0
    %v493 = vadd.f32 %v209, %v492
    %494 = vmatmul.f32.gmra.mxu0 %v72
    %v495 = vpop.f32.mrf.mxu0
    %v496 = vadd.f32 %v209, %v495
    %497 = vmatmul.f32.gmra.mxu0 %v74
    %v498 = vpop.f32.mrf.mxu0
    %v499 = vadd.f32 %v209, %v498
    %500 = vdwg.mxu0
    %501 = vmatpush.xpose.msra.mxu0 %v203
    %502 = vmatpush.xpose.msra.mxu0 %v201
    %503 = vmatpush.xpose.msra.mxu0 %v199
    %504 = vmatpush.xpose.msra.mxu0 %v197
    %505 = vmatpush.xpose.msra.mxu0 %v195
    %506 = vmatpush.xpose.msra.mxu0 %v193
    %507 = vmatpush.xpose.msra.mxu0 %v191
    %508 = vmatpush.xpose.msra.mxu0 %v189
    %509 = vmatpush.xpose.msra.mxu0 %v187
    %510 = vmatpush.xpose.msra.mxu0 %v185
    %511 = vmatpush.xpose.msra.mxu0 %v183
    %512 = vmatpush.xpose.msra.mxu0 %v181
    %513 = vmatpush.xpose.msra.mxu0 %v179
    %514 = vmatpush.xpose.msra.mxu0 %v177
    %515 = vmatpush.xpose.msra.mxu0 %v175
    %516 = vmatpush.xpose.msra.mxu0 %v173
    %517 = vmatmul.f32.gmra.mxu0 %v61
    %v518 = vpop.f32.mrf.mxu0
    %v519 = vadd.f32 %v478, %v518
    %520 = vmatmul.f32.gmra.mxu0 %v63
    %v521 = vpop.f32.mrf.mxu0
    %v522 = vadd.f32 %v481, %v521
    %523 = vmatmul.f32.gmra.mxu0 %v65
    %v524 = vpop.f32.mrf.mxu0
    %v525 = vadd.f32 %v484, %v524
    %526 = vmatmul.f32.gmra.mxu0 %v67
    %v527 = vpop.f32.mrf.mxu0
    %v528 = vadd.f32 %v487, %v527
    %529 = vmatmul.f32.gmra.mxu0 %v69
    %v530 = vpop.f32.mrf.mxu0
    %v531 = vadd.f32 %v490, %v530
    %532 = vmatmul.f32.gmra.mxu0 %v71
    %v533 = vpop.f32.mrf.mxu0
    %v534 = vadd.f32 %v493, %v533
    %535 = vmatmul.f32.gmra.mxu0 %v73
    %v536 = vpop.f32.mrf.mxu0
    %v537 = vadd.f32 %v496, %v536
    %538 = vmatmul.f32.gmra.mxu0 %v75
    %v539 = vpop.f32.mrf.mxu0
    %v540 = vadd.f32 %v499, %v539
    %541 = vdwg.mxu0
    %v542 = vmul.f32 %v273, 0.1
    %v543 = vmul.f32 %v355, 0.1
    %v544 = vmul.f32 %v437, 0.1
    %v545 = vmul.f32 %v519, 0.1
    %v546 = vmul.f32 %v276, 0.1
    %v547 = vmul.f32 %v358, 0.1
    %v548 = vmul.f32 %v440, 0.1
    %v549 = vmul.f32 %v522, 0.1
    %v550 = vmul.f32 %v279, 0.1
    %v551 = vmul.f32 %v361, 0.1
    %v552 = vmul.f32 %v443, 0.1
    %v553 = vmul.f32 %v525, 0.1
    %v554 = vmul.f32 %v282, 0.1
    %v555 = vmul.f32 %v364, 0.1
    %v556 = vmul.f32 %v446, 0.1
    %v557 = vmul.f32 %v528, 0.1
    %v558 = vmul.f32 %v285, 0.1
    %v559 = vmul.f32 %v367, 0.1
    %v560 = vmul.f32 %v449, 0.1
    %v561 = vmul.f32 %v531, 0.1
    %v562 = vmul.f32 %v288, 0.1
    %v563 = vmul.f32 %v370, 0.1
    %v564 = vmul.f32 %v452, 0.1
    %v565 = vmul.f32 %v534, 0.1
    %v566 = vmul.f32 %v291, 0.1
    %v567 = vmul.f32 %v373, 0.1
    %v568 = vmul.f32 %v455, 0.1
    %v569 = vmul.f32 %v537, 0.1
    %v570 = vmul.f32 %v294, 0.1
    %v571 = vmul.f32 %v376, 0.1
    %v572 = vmul.f32 %v458, 0.1
    %v573 = vmul.f32 %v540, 0.1
    %574 = vst [vmem:[#allocation8] sm:$0xff] %v542
    %575 = vst [vmem:[#allocation8 + $0x8] sm:$0xff] %v543
    %576 = vst [vmem:[#allocation8 + $0x10] sm:$0xff] %v544
    %577 = vst [vmem:[#allocation8 + $0x18] sm:$0xff] %v545
    %578 = vst [vmem:[#allocation8 + $0x20] sm:$0xff] %v546
    %579 = vst [vmem:[#allocation8 + $0x28] sm:$0xff] %v547
    %580 = vst [vmem:[#allocation8 + $0x30] sm:$0xff] %v548
    %581 = vst [vmem:[#allocation8 + $0x38] sm:$0xff] %v549
    %582 = vst [vmem:[#allocation8 + $0x40] sm:$0xff] %v550
    %583 = vst [vmem:[#allocation8 + $0x48] sm:$0xff] %v551
    %584 = vst [vmem:[#allocation8 + $0x50] sm:$0xff] %v552
    %585 = vst [vmem:[#allocation8 + $0x58] sm:$0xff] %v553
    %586 = vst [vmem:[#allocation8 + $0x60] sm:$0xff] %v554
    %587 = vst [vmem:[#allocation8 + $0x68] sm:$0xff] %v555
    %588 = vst [vmem:[#allocation8 + $0x70] sm:$0xff] %v556
    %589 = vst [vmem:[#allocation8 + $0x78] sm:$0xff] %v557
    %590 = vst [vmem:[#allocation8 + $0x80] sm:$0xff] %v558
    %591 = vst [vmem:[#allocation8 + $0x88] sm:$0xff] %v559
    %592 = vst [vmem:[#allocation8 + $0x90] sm:$0xff] %v560
    %593 = vst [vmem:[#allocation8 + $0x98] sm:$0xff] %v561
    %594 = vst [vmem:[#allocation8 + $0xa0] sm:$0xff] %v562
    %595 = vst [vmem:[#allocation8 + $0xa8] sm:$0xff] %v563
    %596 = vst [vmem:[#allocation8 + $0xb0] sm:$0xff] %v564
    %597 = vst [vmem:[#allocation8 + $0xb8] sm:$0xff] %v565
    %598 = vst [vmem:[#allocation8 + $0xc0] sm:$0xff] %v566
    %599 = vst [vmem:[#allocation8 + $0xc8] sm:$0xff] %v567
    %600 = vst [vmem:[#allocation8 + $0xd0] sm:$0xff] %v568
    %601 = vst [vmem:[#allocation8 + $0xd8] sm:$0xff] %v569
    %602 = vst [vmem:[#allocation8 + $0xe0] sm:$0xff] %v570
    %603 = vst [vmem:[#allocation8 + $0xe8] sm:$0xff] %v571
    %604 = vst [vmem:[#allocation8 + $0xf0] sm:$0xff] %v572
    %605 = vst [vmem:[#allocation8 + $0xf8] sm:$0xff] %v573
    // Predicated region
    $region26: #{tpu_custom_call.1} parent=1 // pred_check
      _
    $region27: #{tpu_custom_call.1} parent=1 // pred_check_branch
      %607 = sbr.rel (0) target = $region29
    $region28: #{tpu_custom_call.1} parent=1 // pred_region
      %609 = vsyncadd [#allocation4], 0
      %s610 = sshll.u32 [#allocation8], 4
      %s611 = int_to_ptr.vmem [resolvable:$true] %s610
      %s612 = sshll.u32 %s3, 4
      %s613 = int_to_ptr.hbm [resolvable:$true] %s612
      %618 = dma.vmem_to_hbm [thread:$0]  %s611, 4096, %s613, [#allocation4], 512, 512, 32
    $region29: #{tpu_custom_call.1} parent=1 // pred_fallthru
      _
    // Predicated region
    $region30: #{tpu_custom_call.1} parent=1 // pred_check
      _
    $region31: #{tpu_custom_call.1} parent=1 // pred_check_branch
      %620 = sbr.rel (0) target = $region33
    $region32: #{tpu_custom_call.1} parent=1 // pred_region
      %622 = dma.done [#allocation4], 4096
    $region33: #{tpu_custom_call.1} parent=1 // pred_fallthru
      _
    %623 = vsyncpa [#allocation3], 1
    %624 = vsyncpa [#allocation6], 1
    %625 = vsyncpa [#allocation4], 1

</llo_original>
